<compile_context>
chip_gen: v6e
topology: v6e:2x2x1
jax: 0.10.0
libtpu: 0.0.40
codegen_flags: <defaults>
</compile_context>

<pallas_src>
import functools

import jax
import jax.numpy as jnp
from jax import lax
from jax.experimental import pallas as pl
from jax.experimental.pallas import tpu as pltpu


def _round_up(x, m):
    return (x + m - 1) // m * m


# ---------------------------------------------------------------------------
# Fast path: embedding table resident in VMEM, in-kernel dynamic row gather.
# ---------------------------------------------------------------------------
def _pooling_kernel_vmem(ids_ref,    # SMEM (B_pad*S,) int32, scalar-prefetched (flat ids)
                         emb_ref,    # VMEM (V_pad, E_pad) f32 full table (resident)
                         w_ref,      # VMEM (E_pad, C_pad) f32
                         b_ref,      # VMEM (1, C_pad) f32
                         o_ref,      # VMEM (Bt, C_pad) f32 output block
                         gbuf,       # VMEM (Bt, E_pad) f32 per-step gather buffer
                         acc,        # VMEM (Bt, E_pad) f32 running max
                         *, Bt, S):
    i = pl.program_id(0)                       # batch-tile index
    acc[...] = jnp.full(acc.shape, -jnp.inf, dtype=acc.dtype)

    def step(s, carry):
        # Gather the Bt embedding rows for sequence position `s` from the VMEM table.
        for r in range(Bt):                    # Bt is static -> unrolled
            tok = ids_ref[(i * Bt + r) * S + s]
            gbuf[pl.ds(r, 1), :] = emb_ref[pl.ds(tok, 1), :]
        # Max-pool accumulate over lane-dense (Bt, E_pad) blocks.
        acc[...] = jnp.maximum(acc[...], gbuf[...])
        return carry

    lax.fori_loop(0, S, step, 0)

    # Final linear layer on the MXU, lane-dense store (C_pad multiple of 128).
    out = jnp.dot(acc[...], w_ref[...], preferred_element_type=jnp.float32) + b_ref[...]
    o_ref[...] = out.astype(o_ref.dtype)


# ---------------------------------------------------------------------------
# Fallback path: table in HBM, manual row-gather DMAs through a deep ring buffer.
# ---------------------------------------------------------------------------
def _pooling_kernel_hbm(ids_ref,     # SMEM (B_pad*S,) int32
                        emb_hbm,     # HBM  (V_pad, E_pad) f32 (pl.ANY, manual DMA)
                        w_ref,       # VMEM (E_pad, C_pad) f32
                        b_ref,       # VMEM (1, C_pad) f32
                        o_ref,       # VMEM (Bt, C_pad) f32 output block
                        gbuf,        # VMEM (depth, Bt, E_pad) f32 gather ring
                        acc,         # VMEM (Bt, E_pad) f32 running max
                        sems,        # DMA sems (depth, Bt)
                        *, Bt, S, depth):
    i = pl.program_id(0)

    def start_fetch(seq_idx, slot):
        # NOTE: ids are clipped to [0, V) in the wrapper, so DMAs are in-bounds.
        for r in range(Bt):                    # static unroll
            tok = ids_ref[(i * Bt + r) * S + seq_idx]
            pltpu.make_async_copy(
                emb_hbm.at[tok], gbuf.at[slot, r], sems.at[slot, r]).start()

    def wait_fetch(slot):
        for r in range(Bt):
            pltpu.make_async_copy(
                emb_hbm.at[0], gbuf.at[slot, r], sems.at[slot, r]).wait()

    acc[...] = jnp.full(acc.shape, -jnp.inf, dtype=acc.dtype)

    # Prime the ring: up to depth-1 sequence positions in flight before the loop.
    for p in range(min(depth - 1, S)):
        start_fetch(p, p)

    def step(s, carry):
        slot = lax.rem(s, depth)
        # Prefetch BEFORE waiting on the current slot (keeps depth-1 DMAs in flight;
        # also keeps the SMEM id reads ahead of the semaphore wait).
        nxt = s + (depth - 1)

        @pl.when(nxt < S)
        def _():
            start_fetch(nxt, lax.rem(nxt, depth))

        wait_fetch(slot)
        acc[...] = jnp.maximum(acc[...], gbuf[slot])
        return carry

    lax.fori_loop(0, S, step, 0)

    out = jnp.dot(acc[...], w_ref[...], preferred_element_type=jnp.float32) + b_ref[...]
    o_ref[...] = out.astype(o_ref.dtype)


# ---------------------------------------------------------------------------
# Wrapper
# ---------------------------------------------------------------------------
def pooling_model_forward(x, emb, w, b, *, b_tile_max=128,
                          vmem_table_limit_bytes=12 * 1024 * 1024):
    """x: (B,S) int ids, emb: (V,E), w: (E,C), b: (C,). Returns (B,C) float32."""
    B, S = x.shape
    V, E = emb.shape
    C = w.shape[1]

    E_pad = _round_up(E, 128)
    C_pad = _round_up(C, 128)
    V_pad = _round_up(V, 8)

    # --- batch tiling: sublane-aligned, capped, and >=2 tiles when possible so the
    # "parallel" batch axis spans both TensorCores on dual-core chips (v7x).
    B_pad8 = _round_up(B, 8)
    b_tile = max(8, min(b_tile_max, B_pad8))
    if (B_pad8 // b_tile) < 2 and B_pad8 >= 16:
        b_tile = max(8, (B_pad8 // 2 // 8) * 8)
    B_pad = _round_up(B_pad8, b_tile)
    nbt = B_pad // b_tile

    # --- pad / flatten inputs.
    ids = jnp.clip(x.astype(jnp.int32), 0, V - 1)          # guard against OOB tokens
    ids_flat = jnp.zeros((B_pad * S,), jnp.int32).at[:B * S].set(ids.reshape(-1))
    emb_pad = jnp.zeros((V_pad, E_pad), jnp.float32).at[:V, :E].set(emb.astype(jnp.float32))
    w_pad = jnp.zeros((E_pad, C_pad), jnp.float32).at[:E, :C].set(w.astype(jnp.float32))
    b_pad = jnp.zeros((1, C_pad), jnp.float32).at[0, :C].set(b.astype(jnp.float32))

    table_bytes = V_pad * E_pad * 4
    weight_bytes = E_pad * C_pad * 4
    out_bytes = b_tile * C_pad * 4
    bias_bytes = C_pad * 4
    use_vmem_table = table_bytes <= vmem_table_limit_bytes

    if use_vmem_table:
        kernel = functools.partial(_pooling_kernel_vmem, Bt=b_tile, S=S)
        in_specs = [
            pl.BlockSpec((V_pad, E_pad), lambda i, ids: (0, 0)),   # full table, resident
            pl.BlockSpec((E_pad, C_pad), lambda i, ids: (0, 0)),
            pl.BlockSpec((1, C_pad), lambda i, ids: (0, 0)),
        ]
        scratch_shapes = [
            pltpu.VMEM((b_tile, E_pad), jnp.float32),              # gather buffer
            pltpu.VMEM((b_tile, E_pad), jnp.float32),              # max accumulator
        ]
        scratch_bytes = 2 * b_tile * E_pad * 4
        est = 2 * table_bytes + 2 * weight_bytes + 2 * out_bytes + 2 * bias_bytes + scratch_bytes
    else:
        depth = 4
        kernel = functools.partial(_pooling_kernel_hbm, Bt=b_tile, S=S, depth=depth)
        in_specs = [
            pl.BlockSpec(memory_space=pl.ANY),                     # table stays in HBM
            pl.BlockSpec((E_pad, C_pad), lambda i, ids: (0, 0)),
            pl.BlockSpec((1, C_pad), lambda i, ids: (0, 0)),
        ]
        scratch_shapes = [
            pltpu.VMEM((depth, b_tile, E_pad), jnp.float32),       # gather ring
            pltpu.VMEM((b_tile, E_pad), jnp.float32),              # max accumulator
            pltpu.SemaphoreType.DMA((depth, b_tile)),
        ]
        scratch_bytes = (depth + 1) * b_tile * E_pad * 4
        est = 2 * weight_bytes + 2 * out_bytes + 2 * bias_bytes + scratch_bytes

    # Explicit VMEM budget (keeps the fast path usable on v7x's 64 MiB VMEM).
    vmem_limit = int(min(max(est + (8 << 20), 32 << 20), 56 << 20))

    grid_spec = pltpu.PrefetchScalarGridSpec(
        num_scalar_prefetch=1,                                     # flat ids -> SMEM
        grid=(nbt,),                                               # batch tiles only
        in_specs=in_specs,
        out_specs=pl.BlockSpec((b_tile, C_pad), lambda i, ids: (i, 0)),
        scratch_shapes=scratch_shapes,
    )

    out_pad = pl.pallas_call(
        kernel,
        out_shape=jax.ShapeDtypeStruct((B_pad, C_pad), jnp.float32),
        grid_spec=grid_spec,
        compiler_params=pltpu.CompilerParams(
            dimension_semantics=("parallel",),
            vmem_limit_bytes=vmem_limit),
    )(ids_flat, emb_pad, w_pad, b_pad)

    return out_pad[:B, :C]


def _reference(x, emb, w, b):
    embedded = emb[x]                      # (B, S, E)
    pooled = jnp.max(embedded, axis=1)     # (B, E)  -- pooling_type='max'
    return pooled @ w + b                  # (B, C)


if __name__ == "__main__":
    # Small shapes consistent with the module's forward: (batch, seq) int ids.
    B, S = 2, 8            # batch, sequence_length
    V, E, C = 32, 32, 8    # vocab_size, embedding_dim, num_classes

    key = jax.random.PRNGKey(0)
    k_x, k_emb, k_w, k_b = jax.random.split(key, 4)

    x = jax.random.randint(k_x, (B, S), 0, V, dtype=jnp.int32)
    emb = jax.random.normal(k_emb, (V, E), dtype=jnp.float32)          # nn.Embedding weight
    w = jax.random.normal(k_w, (E, C), dtype=jnp.float32) * 0.1        # nn.Linear weight^T
    b = jax.random.normal(k_b, (C,), dtype=jnp.float32) * 0.1          # nn.Linear bias

    out = jax.block_until_ready(pooling_model_forward(x, emb, w, b))
    ref = jax.block_until_ready(_reference(x, emb, w, b))

    assert out.shape == (B, C)
    assert jnp.allclose(out, ref, atol=1e-5, rtol=1e-5), "mismatch vs reference"
    print("KERNEL_OK")
</pallas_src>

<mosaic_0001>
module attributes {stable_mosaic.version = 11 : i64} {
  func.func @_pooling_kernel_vmem(%arg0: i32, %arg1: memref<64xi32, #tpu.memory_space<smem>>, %arg2: memref<32x128xf32, #tpu.memory_space<vmem>>, %arg3: memref<128x128xf32, #tpu.memory_space<vmem>>, %arg4: memref<1x128xf32, #tpu.memory_space<vmem>>, %arg5: memref<8x128xf32, #tpu.memory_space<vmem>>, %arg6: memref<8x128xf32, #tpu.memory_space<vmem>>, %arg7: memref<8x128xf32, #tpu.memory_space<vmem>>) attributes {dimension_semantics = [#tpu.dimension_semantics<parallel>], iteration_bounds = array<i64: 1>, scalar_prefetch = 1 : i64, scratch_operands = 2 : i64, tpu.core_type = #tpu.core_type<tc>, window_params = [{pipeline_mode = #tpu.pipeline_mode<synchronous>, transform_indices = @transform_0, window_bounds = array<i64: 32, 128>}, {pipeline_mode = #tpu.pipeline_mode<synchronous>, transform_indices = @transform_1, window_bounds = array<i64: 128, 128>}, {pipeline_mode = #tpu.pipeline_mode<synchronous>, transform_indices = @transform_2, window_bounds = array<i64: 1, 128>}, {transform_indices = @transform_3, window_bounds = array<i64: 8, 128>}]} {
    %cst = arith.constant 0xFF800000 : f32
    %0 = vector.broadcast %cst : f32 to vector<8x128xf32>
    %c0 = arith.constant 0 : index
    %c0_0 = arith.constant 0 : index
    %1 = vector.load %arg7[%c0, %c0_0] : memref<8x128xf32, #tpu.memory_space<vmem>>, vector<8x128xf32>
    tpu.vector_store %arg7[%c0, %c0_0], %0 {strides = array<i32>} : memref<8x128xf32, #tpu.memory_space<vmem>>, vector<8x128xf32>,
    %c0_i32 = arith.constant 0 : i32
    %c8_i32 = arith.constant 8 : i32
    %2 = arith.addi %c0_i32, %c8_i32 : i32
    %c1_i32 = arith.constant 1 : i32
    scf.for %arg8 = %c0_i32 to %2 step %c1_i32  : i32 {
      %c8_i32_11 = arith.constant 8 : i32
      %10 = arith.muli %arg0, %c8_i32_11 : i32
      %c0_i32_12 = arith.constant 0 : i32
      %11 = arith.addi %10, %c0_i32_12 : i32
      %c8_i32_13 = arith.constant 8 : i32
      %12 = arith.muli %11, %c8_i32_13 : i32
      %13 = arith.addi %12, %arg8 : i32
      %14 = arith.index_cast %13 : i32 to index
      %15 = memref.load %arg1[%14] : memref<64xi32, #tpu.memory_space<smem>>
      %16 = arith.index_cast %15 : i32 to index
      %c0_14 = arith.constant 0 : index
      %17 = vector.load %arg2[%16, %c0_14] : memref<32x128xf32, #tpu.memory_space<vmem>>, vector<1x128xf32>
      %c0_15 = arith.constant 0 : index
      %c0_16 = arith.constant 0 : index
      %18 = vector.load %arg6[%c0_15, %c0_16] : memref<8x128xf32, #tpu.memory_space<vmem>>, vector<1x128xf32>
      tpu.vector_store %arg6[%c0_15, %c0_16], %17 {strides = array<i32>} : memref<8x128xf32, #tpu.memory_space<vmem>>, vector<1x128xf32>,
      %c8_i32_17 = arith.constant 8 : i32
      %19 = arith.muli %arg0, %c8_i32_17 : i32
      %c1_i32_18 = arith.constant 1 : i32
      %20 = arith.addi %19, %c1_i32_18 : i32
      %c8_i32_19 = arith.constant 8 : i32
      %21 = arith.muli %20, %c8_i32_19 : i32
      %22 = arith.addi %21, %arg8 : i32
      %23 = arith.index_cast %22 : i32 to index
      %24 = memref.load %arg1[%23] : memref<64xi32, #tpu.memory_space<smem>>
      %25 = arith.index_cast %24 : i32 to index
      %c0_20 = arith.constant 0 : index
      %26 = vector.load %arg2[%25, %c0_20] : memref<32x128xf32, #tpu.memory_space<vmem>>, vector<1x128xf32>
      %c1 = arith.constant 1 : index
      %c0_21 = arith.constant 0 : index
      %27 = vector.load %arg6[%c1, %c0_21] : memref<8x128xf32, #tpu.memory_space<vmem>>, vector<1x128xf32>
      tpu.vector_store %arg6[%c1, %c0_21], %26 {strides = array<i32>} : memref<8x128xf32, #tpu.memory_space<vmem>>, vector<1x128xf32>,
      %c8_i32_22 = arith.constant 8 : i32
      %28 = arith.muli %arg0, %c8_i32_22 : i32
      %c2_i32 = arith.constant 2 : i32
      %29 = arith.addi %28, %c2_i32 : i32
      %c8_i32_23 = arith.constant 8 : i32
      %30 = arith.muli %29, %c8_i32_23 : i32
      %31 = arith.addi %30, %arg8 : i32
      %32 = arith.index_cast %31 : i32 to index
      %33 = memref.load %arg1[%32] : memref<64xi32, #tpu.memory_space<smem>>
      %34 = arith.index_cast %33 : i32 to index
      %c0_24 = arith.constant 0 : index
      %35 = vector.load %arg2[%34, %c0_24] : memref<32x128xf32, #tpu.memory_space<vmem>>, vector<1x128xf32>
      %c2 = arith.constant 2 : index
      %c0_25 = arith.constant 0 : index
      %36 = vector.load %arg6[%c2, %c0_25] : memref<8x128xf32, #tpu.memory_space<vmem>>, vector<1x128xf32>
      tpu.vector_store %arg6[%c2, %c0_25], %35 {strides = array<i32>} : memref<8x128xf32, #tpu.memory_space<vmem>>, vector<1x128xf32>,
      %c8_i32_26 = arith.constant 8 : i32
      %37 = arith.muli %arg0, %c8_i32_26 : i32
      %c3_i32 = arith.constant 3 : i32
      %38 = arith.addi %37, %c3_i32 : i32
      %c8_i32_27 = arith.constant 8 : i32
      %39 = arith.muli %38, %c8_i32_27 : i32
      %40 = arith.addi %39, %arg8 : i32
      %41 = arith.index_cast %40 : i32 to index
      %42 = memref.load %arg1[%41] : memref<64xi32, #tpu.memory_space<smem>>
      %43 = arith.index_cast %42 : i32 to index
      %c0_28 = arith.constant 0 : index
      %44 = vector.load %arg2[%43, %c0_28] : memref<32x128xf32, #tpu.memory_space<vmem>>, vector<1x128xf32>
      %c3 = arith.constant 3 : index
      %c0_29 = arith.constant 0 : index
      %45 = vector.load %arg6[%c3, %c0_29] : memref<8x128xf32, #tpu.memory_space<vmem>>, vector<1x128xf32>
      tpu.vector_store %arg6[%c3, %c0_29], %44 {strides = array<i32>} : memref<8x128xf32, #tpu.memory_space<vmem>>, vector<1x128xf32>,
      %c8_i32_30 = arith.constant 8 : i32
      %46 = arith.muli %arg0, %c8_i32_30 : i32
      %c4_i32 = arith.constant 4 : i32
      %47 = arith.addi %46, %c4_i32 : i32
      %c8_i32_31 = arith.constant 8 : i32
      %48 = arith.muli %47, %c8_i32_31 : i32
      %49 = arith.addi %48, %arg8 : i32
      %50 = arith.index_cast %49 : i32 to index
      %51 = memref.load %arg1[%50] : memref<64xi32, #tpu.memory_space<smem>>
      %52 = arith.index_cast %51 : i32 to index
      %c0_32 = arith.constant 0 : index
      %53 = vector.load %arg2[%52, %c0_32] : memref<32x128xf32, #tpu.memory_space<vmem>>, vector<1x128xf32>
      %c4 = arith.constant 4 : index
      %c0_33 = arith.constant 0 : index
      %54 = vector.load %arg6[%c4, %c0_33] : memref<8x128xf32, #tpu.memory_space<vmem>>, vector<1x128xf32>
      tpu.vector_store %arg6[%c4, %c0_33], %53 {strides = array<i32>} : memref<8x128xf32, #tpu.memory_space<vmem>>, vector<1x128xf32>,
      %c8_i32_34 = arith.constant 8 : i32
      %55 = arith.muli %arg0, %c8_i32_34 : i32
      %c5_i32 = arith.constant 5 : i32
      %56 = arith.addi %55, %c5_i32 : i32
      %c8_i32_35 = arith.constant 8 : i32
      %57 = arith.muli %56, %c8_i32_35 : i32
      %58 = arith.addi %57, %arg8 : i32
      %59 = arith.index_cast %58 : i32 to index
      %60 = memref.load %arg1[%59] : memref<64xi32, #tpu.memory_space<smem>>
      %61 = arith.index_cast %60 : i32 to index
      %c0_36 = arith.constant 0 : index
      %62 = vector.load %arg2[%61, %c0_36] : memref<32x128xf32, #tpu.memory_space<vmem>>, vector<1x128xf32>
      %c5 = arith.constant 5 : index
      %c0_37 = arith.constant 0 : index
      %63 = vector.load %arg6[%c5, %c0_37] : memref<8x128xf32, #tpu.memory_space<vmem>>, vector<1x128xf32>
      tpu.vector_store %arg6[%c5, %c0_37], %62 {strides = array<i32>} : memref<8x128xf32, #tpu.memory_space<vmem>>, vector<1x128xf32>,
      %c8_i32_38 = arith.constant 8 : i32
      %64 = arith.muli %arg0, %c8_i32_38 : i32
      %c6_i32 = arith.constant 6 : i32
      %65 = arith.addi %64, %c6_i32 : i32
      %c8_i32_39 = arith.constant 8 : i32
      %66 = arith.muli %65, %c8_i32_39 : i32
      %67 = arith.addi %66, %arg8 : i32
      %68 = arith.index_cast %67 : i32 to index
      %69 = memref.load %arg1[%68] : memref<64xi32, #tpu.memory_space<smem>>
      %70 = arith.index_cast %69 : i32 to index
      %c0_40 = arith.constant 0 : index
      %71 = vector.load %arg2[%70, %c0_40] : memref<32x128xf32, #tpu.memory_space<vmem>>, vector<1x128xf32>
      %c6 = arith.constant 6 : index
      %c0_41 = arith.constant 0 : index
      %72 = vector.load %arg6[%c6, %c0_41] : memref<8x128xf32, #tpu.memory_space<vmem>>, vector<1x128xf32>
      tpu.vector_store %arg6[%c6, %c0_41], %71 {strides = array<i32>} : memref<8x128xf32, #tpu.memory_space<vmem>>, vector<1x128xf32>,
      %c8_i32_42 = arith.constant 8 : i32
      %73 = arith.muli %arg0, %c8_i32_42 : i32
      %c7_i32 = arith.constant 7 : i32
      %74 = arith.addi %73, %c7_i32 : i32
      %c8_i32_43 = arith.constant 8 : i32
      %75 = arith.muli %74, %c8_i32_43 : i32
      %76 = arith.addi %75, %arg8 : i32
      %77 = arith.index_cast %76 : i32 to index
      %78 = memref.load %arg1[%77] : memref<64xi32, #tpu.memory_space<smem>>
      %79 = arith.index_cast %78 : i32 to index
      %c0_44 = arith.constant 0 : index
      %80 = vector.load %arg2[%79, %c0_44] : memref<32x128xf32, #tpu.memory_space<vmem>>, vector<1x128xf32>
      %c7 = arith.constant 7 : index
      %c0_45 = arith.constant 0 : index
      %81 = vector.load %arg6[%c7, %c0_45] : memref<8x128xf32, #tpu.memory_space<vmem>>, vector<1x128xf32>
      tpu.vector_store %arg6[%c7, %c0_45], %80 {strides = array<i32>} : memref<8x128xf32, #tpu.memory_space<vmem>>, vector<1x128xf32>,
      %c0_46 = arith.constant 0 : index
      %c0_47 = arith.constant 0 : index
      %82 = vector.load %arg7[%c0_46, %c0_47] : memref<8x128xf32, #tpu.memory_space<vmem>>, vector<8x128xf32>
      %c0_48 = arith.constant 0 : index
      %c0_49 = arith.constant 0 : index
      %83 = vector.load %arg6[%c0_48, %c0_49] : memref<8x128xf32, #tpu.memory_space<vmem>>, vector<8x128xf32>
      %84 = arith.maximumf %82, %83 : vector<8x128xf32>
      %c0_50 = arith.constant 0 : index
      %c0_51 = arith.constant 0 : index
      %85 = vector.load %arg7[%c0_50, %c0_51] : memref<8x128xf32, #tpu.memory_space<vmem>>, vector<8x128xf32>
      tpu.vector_store %arg7[%c0_50, %c0_51], %84 {strides = array<i32>} : memref<8x128xf32, #tpu.memory_space<vmem>>, vector<8x128xf32>,
    }
    %c8_i32_1 = arith.constant 8 : i32
    %c0_2 = arith.constant 0 : index
    %c0_3 = arith.constant 0 : index
    %3 = vector.load %arg7[%c0_2, %c0_3] : memref<8x128xf32, #tpu.memory_space<vmem>>, vector<8x128xf32>
    %c0_4 = arith.constant 0 : index
    %c0_5 = arith.constant 0 : index
    %4 = vector.load %arg3[%c0_4, %c0_5] : memref<128x128xf32, #tpu.memory_space<vmem>>, vector<128x128xf32>
    %cst_6 = arith.constant dense<0.000000e+00> : vector<8x128xf32>
    %5 = tpu.matmul %3, %4, %cst_6 {dimension_numbers = #tpu.dot_dimension_numbers<[1], [0], [0], [1], [0, 0, 1, 1], [], []>} : vector<8x128xf32>, vector<128x128xf32>, vector<8x128xf32> -> vector<8x128xf32>
    %c0_7 = arith.constant 0 : index
    %c0_8 = arith.constant 0 : index
    %6 = vector.load %arg4[%c0_7, %c0_8] : memref<1x128xf32, #tpu.memory_space<vmem>>, vector<1x128xf32>
    %7 = vector.broadcast %6 : vector<1x128xf32> to vector<8x128xf32>
    %8 = arith.addf %5, %7 : vector<8x128xf32>
    %c0_9 = arith.constant 0 : index
    %c0_10 = arith.constant 0 : index
    %9 = vector.load %arg5[%c0_9, %c0_10] : memref<8x128xf32, #tpu.memory_space<vmem>>, vector<8x128xf32>
    tpu.vector_store %arg5[%c0_9, %c0_10], %8 {strides = array<i32>} : memref<8x128xf32, #tpu.memory_space<vmem>>, vector<8x128xf32>,
    return
  }
  func.func @transform_0(%arg0: i32, %arg1: memref<64xi32, #tpu.memory_space<smem>>) -> (i32, i32) {
    %c0_i32 = arith.constant 0 : i32
    %c0_i32_0 = arith.constant 0 : i32
    %c0_i32_1 = arith.constant 0 : i32
    return %c0_i32, %c0_i32_0 : i32, i32
  }
  func.func @transform_1(%arg0: i32, %arg1: memref<64xi32, #tpu.memory_space<smem>>) -> (i32, i32) {
    %c0_i32 = arith.constant 0 : i32
    %c0_i32_0 = arith.constant 0 : i32
    %c0_i32_1 = arith.constant 0 : i32
    return %c0_i32, %c0_i32_0 : i32, i32
  }
  func.func @transform_2(%arg0: i32, %arg1: memref<64xi32, #tpu.memory_space<smem>>) -> (i32, i32) {
    %c0_i32 = arith.constant 0 : i32
    %c0_i32_0 = arith.constant 0 : i32
    %c0_i32_1 = arith.constant 0 : i32
    return %c0_i32, %c0_i32_0 : i32, i32
  }
  func.func @transform_3(%arg0: i32, %arg1: memref<64xi32, #tpu.memory_space<smem>>) -> (i32, i32) {
    %c0_i32 = arith.constant 0 : i32
    %c0_i32_0 = arith.constant 0 : i32
    return %arg0, %c0_i32 : i32, i32
  }
}

</mosaic_0001>

<llo_original>
// kernel: tpu_custom_call.1
$region0: #{tpu_custom_call.1}
  #allocation0 [shape = 'u32[]', space=smem, size = 0x4, offset = 0x4, fixed_abs, tag = 'smem constant byte address 0x4 - core index']
  #allocation1 [shape = 'u32[144,128]{1,0:T(1,128)}', space=vmem, size = 0x12000, scoped, tag = 'internal scratch']
  #allocation2 [shape = 'f32[8,128]{1,0:T(8,128)}', space=vmem, size = 0x1000, scoped, tag = 'scratch operand']
  #allocation3 [shape = 'f32[8,128]{1,0:T(8,128)}', space=vmem, size = 0x1000, scoped, tag = 'scratch operand']
  #allocation4 [shape = 's32[1]{0}', space=sflag, size = 0x4, scoped, tag = 'scoped memory for tpu_custom_call.1']
  #allocation5 [shape = 'u8[512]{0}', space=smem, size = 0x200, scoped, tag = 'prefetched SMEM operand 0']
  %s0 = inlined_call_operand.hbm [shape: s32[64], index: 0, kind: input, shape index: {}]
  %s1 = inlined_call_operand.hbm [shape: f32[32,128], index: 1, kind: input, shape index: {}]
  %s2 = inlined_call_operand.hbm [shape: f32[128,128], index: 2, kind: input, shape index: {}]
  %s3 = inlined_call_operand.vmem [shape: f32[1,128], index: 3, kind: input, shape index: {}]
  %s4 = inlined_call_operand.hbm [shape: f32[8,128], index: 4, kind: output, shape index: {}]
  %s5 = sld [smem:[#allocation0]]
  $region37: #{tpu_custom_call.1} parent=0
    _
  %s7 = ssub.s32 1, %s5
  %s8 = scalar_select 0, %s7, %s5
  %10 = dma.hbm_to_smem %s0, 16, [#allocation5], [#allocation4]
  %11 = dma.done [#allocation4], 16
  %12 = sfence
  $region1: #{tpu_custom_call.1} parent=0
    #allocation6 [shape = 'u8[16384]{0}', space=vmem, size = 0x4000, scoped, tag = 'input window, operand 1, single buffered']
    #allocation7 [shape = 's32[1]{0}', space=sflag, size = 0x4, scoped, tag = 'scoped memory for tpu_custom_call.1']
    #allocation8 [shape = 's32[1]{0}', space=sflag, size = 0x4, scoped, tag = 'scoped memory for tpu_custom_call.1']
    #allocation9 [shape = 'u8[65536]{0}', space=vmem, size = 0x10000, scoped, tag = 'input window, operand 2, single buffered']
    #allocation10 [shape = 's32[1]{0}', space=sflag, size = 0x4, scoped, tag = 'scoped memory for tpu_custom_call.1']
    #allocation11 [shape = 'u8[4096]{0}', space=vmem, size = 0x1000, scoped, tag = 'output window, operand 0, single buffered']
    %13 = vsyncpa [#allocation7], 0
    %14 = vsyncpa [#allocation10], 0
    %15 = vsyncpa [#allocation8], 0
    // Predicated region
    $region2: #{tpu_custom_call.1} parent=1 // pred_check
      _
    $region3: #{tpu_custom_call.1} parent=1 // pred_check_branch
      %17 = sbr.rel (0) target = $region5
    $region4: #{tpu_custom_call.1} parent=1 // pred_region
      %s19 = ssub.s32 512, 512
      %20 = vsyncadd [#allocation7], %s19
      %s21 = sshll.u32 [#allocation6], 4
      %s22 = int_to_ptr.vmem [resolvable:$true] %s21
      %27 = dma.hbm_to_vmem [thread:$0]  %s1, 512, %s22, [#allocation7], 128, 128, 8
    $region5: #{tpu_custom_call.1} parent=1 // pred_fallthru
      _
    // Predicated region
    $region6: #{tpu_custom_call.1} parent=1 // pred_check
      _
    $region7: #{tpu_custom_call.1} parent=1 // pred_check_branch
      %29 = sbr.rel (0) target = $region9
    $region8: #{tpu_custom_call.1} parent=1 // pred_region
      %s31 = ssub.s32 2048, 2048
      %32 = vsyncadd [#allocation10], %s31
      %s33 = sshll.u32 [#allocation9], 4
      %s34 = int_to_ptr.vmem [resolvable:$true] %s33
      %39 = dma.hbm_to_vmem [thread:$0]  %s2, 2048, %s34, [#allocation10], 128, 128, 8
    $region9: #{tpu_custom_call.1} parent=1 // pred_fallthru
      _
    // Predicated region
    $region10: #{tpu_custom_call.1} parent=1 // pred_check
      _
    $region11: #{tpu_custom_call.1} parent=1 // pred_check_branch
      %41 = sbr.rel (0) target = $region13
    $region12: #{tpu_custom_call.1} parent=1 // pred_region
      _
    $region13: #{tpu_custom_call.1} parent=1 // pred_fallthru
      _
    // Predicated region
    $region14: #{tpu_custom_call.1} parent=1 // pred_check
      _
    $region15: #{tpu_custom_call.1} parent=1 // pred_check_branch
      %43 = sbr.rel (0) target = $region17
    $region16: #{tpu_custom_call.1} parent=1 // pred_region
      %44 = dma.done [#allocation7], 512
    $region17: #{tpu_custom_call.1} parent=1 // pred_fallthru
      _
    // Predicated region
    $region18: #{tpu_custom_call.1} parent=1 // pred_check
      _
    $region19: #{tpu_custom_call.1} parent=1 // pred_check_branch
      %46 = sbr.rel (0) target = $region21
    $region20: #{tpu_custom_call.1} parent=1 // pred_region
      %47 = dma.done [#allocation10], 2048
    $region21: #{tpu_custom_call.1} parent=1 // pred_fallthru
      _
    %48 = vst [vmem:[#allocation3] sm:$0xff] -inf
    loop: start=0, step=1, limit=8
    $region22: #{tpu_custom_call.1} parent=1 // loop_pre_header
      _
    $region23: #{tpu_custom_call.1} parent=1 // loop_header
      %s50 = sphi 0, %s54
      %p51 = scmp.ge.s32.totalorder %s50, 8
    $region24: #{tpu_custom_call.1} parent=1 // loop_header_branch
      %53 = sbr.rel (%p51) target = $region28
    $region25: #{tpu_custom_call.1} parent=1 // loop_body
      %s55 = smul.u32 0, 64
      %s56 = sadd.s32 %s55, %s50
      %s57 = sld [smem:[#allocation5 + %s56]]
      %s58 = scalar_lea.vmem [#allocation6], %s57
      %v59 = vld [vmem:[%s58] sm:$0x1]
      %60 = vst [vmem:[#allocation2] sm:$0x1] %v59
      %s61 = smul.u32 0, 8
      %s62 = sadd.s32 %s61, 1
      %s63 = smul.u32 %s62, 8
      %s64 = sadd.s32 %s63, %s50
      %s65 = sld [smem:[#allocation5 + %s64]]
      %s66 = scalar_lea.vmem [#allocation6], %s65
      %v67 = vld [vmem:[%s66] sm:$0x1]
      %68 = vst [vmem:[#allocation2 + $0x1] sm:$0x1] %v67
      %s69 = sadd.s32 %s61, 2
      %s70 = smul.u32 %s69, 8
      %s71 = sadd.s32 %s70, %s50
      %s72 = sld [smem:[#allocation5 + %s71]]
      %s73 = scalar_lea.vmem [#allocation6], %s72
      %v74 = vld [vmem:[%s73] sm:$0x1]
      %75 = vst [vmem:[#allocation2 + $0x2] sm:$0x1] %v74
      %s76 = sadd.s32 %s61, 3
      %s77 = smul.u32 %s76, 8
      %s78 = sadd.s32 %s77, %s50
      %s79 = sld [smem:[#allocation5 + %s78]]
      %s80 = scalar_lea.vmem [#allocation6], %s79
      %v81 = vld [vmem:[%s80] sm:$0x1]
      %82 = vst [vmem:[#allocation2 + $0x3] sm:$0x1] %v81
      %s83 = sadd.s32 %s61, 4
      %s84 = smul.u32 %s83, 8
      %s85 = sadd.s32 %s84, %s50
      %s86 = sld [smem:[#allocation5 + %s85]]
      %s87 = scalar_lea.vmem [#allocation6], %s86
      %v88 = vld [vmem:[%s87] sm:$0x1]
      %89 = vst [vmem:[#allocation2 + $0x4] sm:$0x1] %v88
      %s90 = sadd.s32 %s61, 5
      %s91 = smul.u32 %s90, 8
      %s92 = sadd.s32 %s91, %s50
      %s93 = sld [smem:[#allocation5 + %s92]]
      %s94 = scalar_lea.vmem [#allocation6], %s93
      %v95 = vld [vmem:[%s94] sm:$0x1]
      %96 = vst [vmem:[#allocation2 + $0x5] sm:$0x1] %v95
      %s97 = sadd.s32 %s61, 6
      %s98 = smul.u32 %s97, 8
      %s99 = sadd.s32 %s98, %s50
      %s100 = sld [smem:[#allocation5 + %s99]]
      %s101 = scalar_lea.vmem [#allocation6], %s100
      %v102 = vld [vmem:[%s101] sm:$0x1]
      %103 = vst [vmem:[#allocation2 + $0x6] sm:$0x1] %v102
      %s104 = sadd.s32 %s61, 7
      %s105 = smul.u32 %s104, 8
      %s106 = sadd.s32 %s105, %s50
      %s107 = sld [smem:[#allocation5 + %s106]]
      %s108 = scalar_lea.vmem [#allocation6], %s107
      %v109 = vld [vmem:[%s108] sm:$0x1]
      %110 = vst [vmem:[#allocation2 + $0x7] sm:$0x1] %v109
      %v111 = vld [vmem:[#allocation3] sm:$0xff]
      %v112 = vld [vmem:[#allocation2] sm:$0xff]
      %v113 = vmax.f32 %v111, %v112
      %114 = vst [vmem:[#allocation3] sm:$0xff] %v113
    $region26: #{tpu_custom_call.1} parent=1 // loop_footer
      %s54 = sadd.s32 1, %s50
    $region27: #{tpu_custom_call.1} parent=1 // loop_footer_branch
      %49 = sbr.rel target = $region23
    $region28: #{tpu_custom_call.1} parent=1 // loop_exit
      _
    %v115 = vld [vmem:[#allocation3] sm:$0xff]
    %v116 = vld [vmem:[#allocation9] sm:$0xff]
    %v117 = vld [vmem:[#allocation9 + $0x8] sm:$0xff]
    %v118 = vld [vmem:[#allocation9 + $0x10] sm:$0xff]
    %v119 = vld [vmem:[#allocation9 + $0x18] sm:$0xff]
    %v120 = vld [vmem:[#allocation9 + $0x20] sm:$0xff]
    %v121 = vld [vmem:[#allocation9 + $0x28] sm:$0xff]
    %v122 = vld [vmem:[#allocation9 + $0x30] sm:$0xff]
    %v123 = vld [vmem:[#allocation9 + $0x38] sm:$0xff]
    %v124 = vld [vmem:[#allocation9 + $0x40] sm:$0xff]
    %v125 = vld [vmem:[#allocation9 + $0x48] sm:$0xff]
    %v126 = vld [vmem:[#allocation9 + $0x50] sm:$0xff]
    %v127 = vld [vmem:[#allocation9 + $0x58] sm:$0xff]
    %v128 = vld [vmem:[#allocation9 + $0x60] sm:$0xff]
    %v129 = vld [vmem:[#allocation9 + $0x68] sm:$0xff]
    %v130 = vld [vmem:[#allocation9 + $0x70] sm:$0xff]
    %v131 = vld [vmem:[#allocation9 + $0x78] sm:$0xff]
    %v132 = vld [vmem:[%s3] sm:$0x1]
    %v134 = vlaneseq
    %v135 = vshrl.u32 %v134, 7
    %v136 = vsub.s32 0, %v135
    %v137 = vrot.slane %v132, %v136
    %139 = vmatprep.subr.mxu0 0.0
    %140 = vmatpush1.msra.mxu0 %v131
    %141 = vmatprep.subr.mxu0 0.0
    %142 = vmatpush1.msra.mxu0 %v130
    %143 = vmatprep.subr.mxu0 0.0
    %144 = vmatpush1.msra.mxu0 %v129
    %145 = vmatprep.subr.mxu0 0.0
    %146 = vmatpush1.msra.mxu0 %v128
    %147 = vmatprep.subr.mxu0 0.0
    %148 = vmatpush1.msra.mxu0 %v127
    %149 = vmatprep.subr.mxu0 0.0
    %150 = vmatpush1.msra.mxu0 %v126
    %151 = vmatprep.subr.mxu0 0.0
    %152 = vmatpush1.msra.mxu0 %v125
    %153 = vmatprep.subr.mxu0 0.0
    %154 = vmatpush1.msra.mxu0 %v124
    %155 = vmatprep.subr.mxu0 0.0
    %156 = vmatpush1.msra.mxu0 %v123
    %157 = vmatprep.subr.mxu0 0.0
    %158 = vmatpush1.msra.mxu0 %v122
    %159 = vmatprep.subr.mxu0 0.0
    %160 = vmatpush1.msra.mxu0 %v121
    %161 = vmatprep.subr.mxu0 0.0
    %162 = vmatpush1.msra.mxu0 %v120
    %163 = vmatprep.subr.mxu0 0.0
    %164 = vmatpush1.msra.mxu0 %v119
    %165 = vmatprep.subr.mxu0 0.0
    %166 = vmatpush1.msra.mxu0 %v118
    %167 = vmatprep.subr.mxu0 0.0
    %168 = vmatpush1.msra.mxu0 %v117
    %169 = vmatprep.subr.mxu0 0.0
    %170 = vmatpush1.msra.mxu0 %v116
    %171 = vmatprep.subr.mxu0 0.0
    %172 = vmatpush2.msra.mxu0 0.0
    %173 = vmatprep.subr.mxu0 0.0
    %174 = vmatpush2.msra.mxu0 0.0
    %175 = vmatprep.subr.mxu0 0.0
    %176 = vmatpush2.msra.mxu0 0.0
    %177 = vmatprep.subr.mxu0 0.0
    %178 = vmatpush2.msra.mxu0 0.0
    %179 = vmatprep.subr.mxu0 0.0
    %180 = vmatpush2.msra.mxu0 0.0
    %181 = vmatprep.subr.mxu0 0.0
    %182 = vmatpush2.msra.mxu0 0.0
    %183 = vmatprep.subr.mxu0 0.0
    %184 = vmatpush2.msra.mxu0 0.0
    %185 = vmatprep.subr.mxu0 0.0
    %186 = vmatpush2.msra.mxu0 0.0
    %187 = vmatprep.subr.mxu0 0.0
    %188 = vmatpush2.msra.mxu0 0.0
    %189 = vmatprep.subr.mxu0 0.0
    %190 = vmatpush2.msra.mxu0 0.0
    %191 = vmatprep.subr.mxu0 0.0
    %192 = vmatpush2.msra.mxu0 0.0
    %193 = vmatprep.subr.mxu0 0.0
    %194 = vmatpush2.msra.mxu0 0.0
    %195 = vmatprep.subr.mxu0 0.0
    %196 = vmatpush2.msra.mxu0 0.0
    %197 = vmatprep.subr.mxu0 0.0
    %198 = vmatpush2.msra.mxu0 0.0
    %199 = vmatprep.subr.mxu0 0.0
    %200 = vmatpush2.msra.mxu0 0.0
    %201 = vmatprep.subr.mxu0 0.0
    %202 = vmatpush2.msra.mxu0 0.0
    %203 = vmatprep.mubr.f32.mxu0 0.0
    %204 = vmatmul.mubr.f32.gmra.mxu0 %v115
    %v205 = vpop.f32.mrf.mxu0
    %v206 = vadd.f32 %v137, %v205
    %v207 = vpop.f32.mrf.mxu0
    %208 = vdwg.mxu0
    %209 = vst [vmem:[#allocation11] sm:$0xff] %v206
    // Predicated region
    $region29: #{tpu_custom_call.1} parent=1 // pred_check
      _
    $region30: #{tpu_custom_call.1} parent=1 // pred_check_branch
      %211 = sbr.rel (0) target = $region32
    $region31: #{tpu_custom_call.1} parent=1 // pred_region
      %s213 = ssub.s32 128, 128
      %214 = vsyncadd [#allocation8], %s213
      %s216 = sshll.u32 [#allocation11], 4
      %s217 = int_to_ptr.vmem [resolvable:$true] %s216
      %219 = dma.vmem_to_hbm [thread:$0]  %s217, 128, %s4, [#allocation8]
    $region32: #{tpu_custom_call.1} parent=1 // pred_fallthru
      _
    // Predicated region
    $region33: #{tpu_custom_call.1} parent=1 // pred_check
      _
    $region34: #{tpu_custom_call.1} parent=1 // pred_check_branch
      %221 = sbr.rel (0) target = $region36
    $region35: #{tpu_custom_call.1} parent=1 // pred_region
      %222 = dma.done [#allocation8], 128
    $region36: #{tpu_custom_call.1} parent=1 // pred_fallthru
      _
    %223 = vsyncpa [#allocation7], 1
    %224 = vsyncpa [#allocation10], 1
    %225 = vsyncpa [#allocation8], 1

</llo_original>
